<compile_context>
chip_gen: v5e
topology: v5e:2x2
jax: 0.10.0
libtpu: 0.0.40
codegen_flags: <defaults>
</compile_context>

<pallas_src>
import jax
import jax.numpy as jnp
from jax.experimental import pallas as pl
from jax.experimental.pallas import tpu as pltpu

_LANES = 128


def _round_up(x: int, m: int) -> int:
    return ((x + m - 1) // m) * m


def _round_down(x: int, m: int) -> int:
    return (x // m) * m


def _edge_decoder_kernel(z_ref, w1_ref, b1_ref, w2_ref, b2_ref, o_ref):
    """One edge tile, transposed layout.

    z_ref  : (2H, TE)  [user ; product] features for TE edges (transposed)
    w1_ref : (H, 2H)   lin1 weight, PyTorch (out, in) layout, used directly
    b1_ref : (H, 1)    lin1 bias (f32)
    w2_ref : (H, 1)    lin2 weight as a column (f32)
    b2_ref : (1, 1)    lin2 bias (f32)
    o_ref  : (1, TE)   lane-dense scores (f32)
    """
    # h^T = relu(W1 @ z^T + b1) -> (H, TE); MXU matmul with f32 accumulation.
    h = jnp.dot(w1_ref[...], z_ref[...], preferred_element_type=jnp.float32)
    h = jnp.maximum(h + b1_ref[...], 0.0)
    # lin2 (N = 1): VPU multiply + sublane (XLU) reduction -> result already
    # lane-dense.  (Could move to a (1,H)@(H,TE) MXU matmul if VPU/XLU ever
    # becomes the saturated slot at large H; low priority while DMA-bound.)
    out = jnp.sum(h * w2_ref[...], axis=0, keepdims=True) + b2_ref[...]
    o_ref[...] = out.astype(o_ref.dtype)


def _pick_tile_and_vmem_limit(e_pad: int, hidden: int, z_bytes: int,
                              tile_e_max: int):
    """Edge-tile width + explicit VMEM limit from a per-generation budget."""
    try:  # v5e/v6e: 128 MiB physical VMEM, v7x: 64 MiB.
        phys = int(pltpu.get_tpu_info().vmem_capacity_bytes)
    except Exception:  # conservative fallback: fits every generation's default
        phys = None
    if phys is None:
        budget, vmem_limit = 16 << 20, None
    else:
        budget = min(phys // 2, 48 << 20)      # v7x -> 32 MiB, v5e/v6e -> 48 MiB
        vmem_limit = int(min(phys, budget + (16 << 20)))

    # VMEM cost model (bytes):
    #   double-buffered z tile      : 2 * 2H * TE * z_bytes
    #   double-buffered (1,TE) out  : 2 * TE * 4
    #   f32 h temporary             : H * TE * 4
    #   resident weights (2 bufs; pipeline_mode=pl.Buffered(1) would halve
    #   this for the constant-index blocks — only matters at very large H)
    weight_bytes = 2 * (hidden * 2 * hidden * z_bytes + (2 * hidden + 1) * 4)
    per_lane = 2 * (2 * hidden) * z_bytes + 2 * 4 + hidden * 4
    te = (budget - weight_bytes - (1 << 20)) // per_lane   # 1 MiB slack
    te = min(te, tile_e_max, e_pad)
    te = max(_LANES, _round_down(int(te), _LANES))

    # v7x megacore: keep >= 2 grid steps when there is enough work so both
    # TensorCores get a share (no-op on single-core v5e/v6e).
    if te >= e_pad and e_pad >= 16 * _LANES:
        te = _round_up(-(-e_pad // 2), _LANES)
    return int(te), vmem_limit


def edge_decoder(z_user, z_prod, edge_label_index, w1, b1, w2, b2, *,
                 tile_e=32768, use_bf16=True):
    """Pallas implementation of EdgeDecoder.forward.

    z_user : (Nu, H)   z_dict['user']
    z_prod : (Np, H)   z_dict['products']
    edge_label_index : (2, E) int
    w1 : (H, 2H)  b1 : (H,)   (PyTorch Linear layout: out_features x in_features)
    w2 : (1, H)   b2 : (1,)
    returns: (E,) float32
    """
    hidden = z_user.shape[-1]
    row, col = edge_label_index[0], edge_label_index[1]
    e = int(row.shape[0])
    if e == 0:                                   # degenerate: no edges to score
        return jnp.zeros((0,), jnp.float32)

    z_dtype = jnp.bfloat16 if use_bf16 else jnp.float32
    z_bytes = 2 if use_bf16 else 4

    # Pad the edge dim only to the 128-lane boundary; the (possibly ragged)
    # last grid block is masked by Pallas.
    e_pad = _round_up(e, _LANES)
    tile_cap = max(_LANES, _round_down(int(tile_e), _LANES))
    te, vmem_limit = _pick_tile_and_vmem_limit(e_pad, hidden, z_bytes, tile_cap)
    grid = (pl.cdiv(e_pad, te),)

    # Glue (XLA): contiguous ROW gather + concat + cast (no full node-table
    # transpose is materialized).  Padded edges reuse index 0 and are sliced
    # off at the end.
    # TODO(synk): fuse this gather into the kernel (see header) to remove the
    # remaining HBM round trip of zT.
    pad = e_pad - e
    rowp = jnp.pad(row.astype(jnp.int32), (0, pad))
    colp = jnp.pad(col.astype(jnp.int32), (0, pad))
    z_cat = jnp.concatenate(
        [jnp.take(z_user, rowp, axis=0), jnp.take(z_prod, colp, axis=0)],
        axis=-1).astype(z_dtype)                 # (E_pad, 2H)
    zT = z_cat.T                                 # (2H, E_pad): features on sublanes

    w1_c = w1.astype(z_dtype)                            # (H, 2H)
    b1_c = b1.reshape(hidden, 1).astype(jnp.float32)     # (H, 1)
    w2_c = w2.reshape(hidden, 1).astype(jnp.float32)     # (H, 1) == w2.T
    b2_c = b2.reshape(1, 1).astype(jnp.float32)          # (1, 1)

    flops = 2 * e_pad * (2 * hidden * hidden + hidden)   # lin1 + lin2
    bytes_accessed = (zT.size * z_bytes + w1_c.size * z_bytes
                      + (b1_c.size + w2_c.size + b2_c.size) * 4 + e_pad * 4)

    if vmem_limit is None:
        compiler_params = pltpu.CompilerParams(dimension_semantics=("parallel",))
    else:
        compiler_params = pltpu.CompilerParams(
            dimension_semantics=("parallel",), vmem_limit_bytes=vmem_limit)

    out = pl.pallas_call(
        _edge_decoder_kernel,
        out_shape=jax.ShapeDtypeStruct((1, e_pad), jnp.float32),
        grid_spec=pltpu.PrefetchScalarGridSpec(
            num_scalar_prefetch=0,
            grid=grid,
            in_specs=[
                pl.BlockSpec((2 * hidden, te), lambda i: (0, i)),     # z (streamed)
                pl.BlockSpec((hidden, 2 * hidden), lambda i: (0, 0)),  # w1 (resident)
                pl.BlockSpec((hidden, 1), lambda i: (0, 0)),           # b1 (resident)
                pl.BlockSpec((hidden, 1), lambda i: (0, 0)),           # w2 (resident)
                pl.BlockSpec((1, 1), lambda i: (0, 0)),                # b2 (resident)
            ],
            out_specs=pl.BlockSpec((1, te), lambda i: (0, i)),
        ),
        compiler_params=compiler_params,
        cost_estimate=pl.CostEstimate(
            flops=int(flops), transcendentals=0,
            bytes_accessed=int(bytes_accessed)),
    )(zT, w1_c, b1_c, w2_c, b2_c)

    return out[0, :e]                            # z.view(-1)


def _ref_forward(z_user, z_prod, edge_label_index, w1, b1, w2, b2):
    """Pure-JAX reference mirroring the PyTorch module."""
    row, col = edge_label_index[0], edge_label_index[1]
    z = jnp.concatenate([z_user[row], z_prod[col]], axis=-1)
    z = jnp.maximum(z @ w1.T + b1, 0.0)
    z = z @ w2.T + b2
    return z.reshape(-1)


if __name__ == "__main__":
    H = 32           # hidden_channels
    NU, NP = 16, 24  # number of user / product nodes
    E = 8            # number of edges to score

    key = jax.random.PRNGKey(0)
    k_zu, k_zp, k_row, k_col, k_w1, k_b1, k_w2, k_b2 = jax.random.split(key, 8)

    z_user = jax.random.normal(k_zu, (NU, H), dtype=jnp.float32)
    z_prod = jax.random.normal(k_zp, (NP, H), dtype=jnp.float32)
    row = jax.random.randint(k_row, (E,), 0, NU, dtype=jnp.int32)
    col = jax.random.randint(k_col, (E,), 0, NP, dtype=jnp.int32)
    edge_label_index = jnp.stack([row, col], axis=0)   # (2, E)

    # Deterministic parameter init (mimicking torch.nn.Linear uniform init).
    lim1 = 1.0 / jnp.sqrt(2.0 * H)
    w1 = jax.random.uniform(k_w1, (H, 2 * H), minval=-lim1, maxval=lim1,
                            dtype=jnp.float32)
    b1 = jax.random.uniform(k_b1, (H,), minval=-lim1, maxval=lim1,
                            dtype=jnp.float32)
    lim2 = 1.0 / jnp.sqrt(float(H))
    w2 = jax.random.uniform(k_w2, (1, H), minval=-lim2, maxval=lim2,
                            dtype=jnp.float32)
    b2 = jax.random.uniform(k_b2, (1,), minval=-lim2, maxval=lim2,
                            dtype=jnp.float32)

    ref = _ref_forward(z_user, z_prod, edge_label_index, w1, b1, w2, b2)

    # Default path (bf16 stream, f32 accumulation/epilogue): loose tolerance.
    out = edge_decoder(z_user, z_prod, edge_label_index, w1, b1, w2, b2)
    out = jax.block_until_ready(out)
    assert out.shape == (E,)
    assert jnp.allclose(out, ref, atol=1e-1, rtol=1e-1), (out, ref)

    # f32 storage/compute path: must match the reference tightly.
    out_f32 = edge_decoder(z_user, z_prod, edge_label_index, w1, b1, w2, b2,
                           use_bf16=False)
    out_f32 = jax.block_until_ready(out_f32)
    assert jnp.allclose(out_f32, ref, atol=1e-5, rtol=1e-5), (out_f32, ref)

    print("KERNEL_OK")
</pallas_src>

<mosaic_0001>
module attributes {stable_mosaic.version = 11 : i64} {
  func.func @_edge_decoder_kernel(%arg0: i32, %arg1: memref<64x128xbf16, #tpu.memory_space<vmem>>, %arg2: memref<32x64xbf16, #tpu.memory_space<vmem>>, %arg3: memref<32x1xf32, #tpu.memory_space<vmem>>, %arg4: memref<32x1xf32, #tpu.memory_space<vmem>>, %arg5: memref<1x1xf32, #tpu.memory_space<vmem>>, %arg6: memref<1x128xf32, #tpu.memory_space<vmem>>) attributes {dimension_semantics = [#tpu.dimension_semantics<parallel>], iteration_bounds = array<i64: 1>, scalar_prefetch = 0 : i64, scratch_operands = 0 : i64, tpu.core_type = #tpu.core_type<tc>, window_params = [{transform_indices = @transform_0, window_bounds = array<i64: 64, 128>}, {pipeline_mode = #tpu.pipeline_mode<synchronous>, transform_indices = @transform_1, window_bounds = array<i64: 32, 64>}, {pipeline_mode = #tpu.pipeline_mode<synchronous>, transform_indices = @transform_2, window_bounds = array<i64: 32, 1>}, {pipeline_mode = #tpu.pipeline_mode<synchronous>, transform_indices = @transform_3, window_bounds = array<i64: 32, 1>}, {pipeline_mode = #tpu.pipeline_mode<synchronous>, transform_indices = @transform_4, window_bounds = array<i64: 1, 1>}, {transform_indices = @transform_5, window_bounds = array<i64: 1, 128>}]} {
    %c0 = arith.constant 0 : index
    %c0_0 = arith.constant 0 : index
    %0 = vector.load %arg2[%c0, %c0_0] : memref<32x64xbf16, #tpu.memory_space<vmem>>, vector<32x64xbf16>
    %c0_1 = arith.constant 0 : index
    %c0_2 = arith.constant 0 : index
    %1 = vector.load %arg1[%c0_1, %c0_2] : memref<64x128xbf16, #tpu.memory_space<vmem>>, vector<64x128xbf16>
    %cst = arith.constant dense<0.000000e+00> : vector<32x128xf32>
    %2 = tpu.matmul %0, %1, %cst {dimension_numbers = #tpu.dot_dimension_numbers<[1], [0], [0], [1], [0, 0, 1, 1], [], []>} : vector<32x64xbf16>, vector<64x128xbf16>, vector<32x128xf32> -> vector<32x128xf32>
    %c0_3 = arith.constant 0 : index
    %c0_4 = arith.constant 0 : index
    %3 = vector.load %arg3[%c0_3, %c0_4] : memref<32x1xf32, #tpu.memory_space<vmem>>, vector<32x1xf32>
    %4 = vector.broadcast %3 : vector<32x1xf32> to vector<32x128xf32>
    %5 = arith.addf %2, %4 : vector<32x128xf32>
    %cst_5 = arith.constant 0.000000e+00 : f32
    %6 = vector.broadcast %cst_5 : f32 to vector<32x128xf32>
    %7 = arith.maximumf %5, %6 : vector<32x128xf32>
    %c0_6 = arith.constant 0 : index
    %c0_7 = arith.constant 0 : index
    %8 = vector.load %arg4[%c0_6, %c0_7] : memref<32x1xf32, #tpu.memory_space<vmem>>, vector<32x1xf32>
    %9 = vector.broadcast %8 : vector<32x1xf32> to vector<32x128xf32>
    %10 = arith.mulf %7, %9 : vector<32x128xf32>
    %cst_8 = arith.constant dense<0.000000e+00> : vector<128xf32>
    %11 = vector.multi_reduction <add>, %10, %cst_8 [0] : vector<32x128xf32> to vector<128xf32>
    %12 = vector.shape_cast %11 : vector<128xf32> to vector<1x128xf32>
    %c0_9 = arith.constant 0 : index
    %c0_10 = arith.constant 0 : index
    %13 = vector.load %arg5[%c0_9, %c0_10] : memref<1x1xf32, #tpu.memory_space<vmem>>, vector<1x1xf32>
    %14 = vector.broadcast %13 : vector<1x1xf32> to vector<1x128xf32>
    %15 = arith.addf %12, %14 : vector<1x128xf32>
    %c0_11 = arith.constant 0 : index
    %c0_12 = arith.constant 0 : index
    %16 = vector.load %arg6[%c0_11, %c0_12] : memref<1x128xf32, #tpu.memory_space<vmem>>, vector<1x128xf32>
    tpu.vector_store %arg6[%c0_11, %c0_12], %15 {strides = array<i32>} : memref<1x128xf32, #tpu.memory_space<vmem>>, vector<1x128xf32>,
    return
  }
  func.func @transform_0(%arg0: i32) -> (i32, i32) {
    %c0_i32 = arith.constant 0 : i32
    %c0_i32_0 = arith.constant 0 : i32
    return %c0_i32, %arg0 : i32, i32
  }
  func.func @transform_1(%arg0: i32) -> (i32, i32) {
    %c0_i32 = arith.constant 0 : i32
    %c0_i32_0 = arith.constant 0 : i32
    %c0_i32_1 = arith.constant 0 : i32
    return %c0_i32, %c0_i32_0 : i32, i32
  }
  func.func @transform_2(%arg0: i32) -> (i32, i32) {
    %c0_i32 = arith.constant 0 : i32
    %c0_i32_0 = arith.constant 0 : i32
    %c0_i32_1 = arith.constant 0 : i32
    return %c0_i32, %c0_i32_0 : i32, i32
  }
  func.func @transform_3(%arg0: i32) -> (i32, i32) {
    %c0_i32 = arith.constant 0 : i32
    %c0_i32_0 = arith.constant 0 : i32
    %c0_i32_1 = arith.constant 0 : i32
    return %c0_i32, %c0_i32_0 : i32, i32
  }
  func.func @transform_4(%arg0: i32) -> (i32, i32) {
    %c0_i32 = arith.constant 0 : i32
    %c0_i32_0 = arith.constant 0 : i32
    %c0_i32_1 = arith.constant 0 : i32
    return %c0_i32, %c0_i32_0 : i32, i32
  }
  func.func @transform_5(%arg0: i32) -> (i32, i32) {
    %c0_i32 = arith.constant 0 : i32
    %c0_i32_0 = arith.constant 0 : i32
    return %c0_i32, %arg0 : i32, i32
  }
}

</mosaic_0001>

<llo_original>
// kernel: tpu_custom_call.1
$region0: #{tpu_custom_call.1}
  #allocation0 [shape = 'u32[]', space=smem, size = 0x4, offset = 0x4, fixed_abs, tag = 'smem constant byte address 0x4 - core index']
  #allocation1 [shape = 'u32[72,128]{1,0:T(1,128)}', space=vmem, size = 0x9000, scoped, tag = 'internal scratch']
  #allocation2 [shape = 'f32[1,1]{1,0:T(1,128)S(1)}', space=vmem, size = 0x200, scoped, tag = 'scoped memory for tpu_custom_call.1']
  %s0 = inlined_call_operand.vmem [shape: bf16[64,128], index: 0, kind: input, shape index: {}]
  %s1 = inlined_call_operand.vmem [shape: bf16[32,64], index: 1, kind: input, shape index: {}]
  %s2 = inlined_call_operand.vmem [shape: f32[32,1], index: 2, kind: input, shape index: {}]
  %s3 = inlined_call_operand.vmem [shape: f32[32,1], index: 3, kind: input, shape index: {}]
  %s4 = inlined_call_operand.<no memory space> [shape: f32[1,1], index: 4, kind: input, shape index: {}]
  %s5 = inlined_call_operand.hbm [shape: f32[1,128], index: 5, kind: output, shape index: {}]
  %s6 = sld [smem:[#allocation0]]
  $region30: #{tpu_custom_call.1} parent=0
    _
  %s8 = ssub.s32 1, %s6
  %s9 = scalar_select 0, %s8, %s6
  %v10 = vstv %s4
  %11 = vst [vmem:[#allocation2] sm:$0x1] %v10
  $region1: #{tpu_custom_call.1} parent=0
    #allocation3 [shape = 'u8[512]{0}', space=vmem, size = 0x400, scoped, tag = 'output window, operand 0, single buffered']
    #allocation4 [shape = 's32[1]{0}', space=sflag, size = 0x4, scoped, tag = 'scoped memory for tpu_custom_call.1']
    %12 = vsyncpa [#allocation4], 0
    // Predicated region
    $region2: #{tpu_custom_call.1} parent=1 // pred_check
      _
    $region3: #{tpu_custom_call.1} parent=1 // pred_check_branch
      %14 = sbr.rel (0) target = $region5
    $region4: #{tpu_custom_call.1} parent=1 // pred_region
      _
    $region5: #{tpu_custom_call.1} parent=1 // pred_fallthru
      _
    // Predicated region
    $region6: #{tpu_custom_call.1} parent=1 // pred_check
      _
    $region7: #{tpu_custom_call.1} parent=1 // pred_check_branch
      %16 = sbr.rel (0) target = $region9
    $region8: #{tpu_custom_call.1} parent=1 // pred_region
      _
    $region9: #{tpu_custom_call.1} parent=1 // pred_fallthru
      _
    // Predicated region
    $region10: #{tpu_custom_call.1} parent=1 // pred_check
      _
    $region11: #{tpu_custom_call.1} parent=1 // pred_check_branch
      %18 = sbr.rel (0) target = $region13
    $region12: #{tpu_custom_call.1} parent=1 // pred_region
      _
    $region13: #{tpu_custom_call.1} parent=1 // pred_fallthru
      _
    // Predicated region
    $region14: #{tpu_custom_call.1} parent=1 // pred_check
      _
    $region15: #{tpu_custom_call.1} parent=1 // pred_check_branch
      %20 = sbr.rel (0) target = $region17
    $region16: #{tpu_custom_call.1} parent=1 // pred_region
      _
    $region17: #{tpu_custom_call.1} parent=1 // pred_fallthru
      _
    // Predicated region
    $region18: #{tpu_custom_call.1} parent=1 // pred_check
      _
    $region19: #{tpu_custom_call.1} parent=1 // pred_check_branch
      %22 = sbr.rel (0) target = $region21
    $region20: #{tpu_custom_call.1} parent=1 // pred_region
      _
    $region21: #{tpu_custom_call.1} parent=1 // pred_fallthru
      _
    %v24 = vld [vmem:[%s1] sm:$0xf]
    %v25 = vld [vmem:[%s1 + $0x4] sm:$0xf]
    %v26 = vld [vmem:[%s1 + $0x8] sm:$0xf]
    %v27 = vld [vmem:[%s1 + $0xc] sm:$0xf]
    %v28 = vld [vmem:[%s0] sm:$0xf]
    %v29 = vld [vmem:[%s0 + $0x4] sm:$0xf]
    %v30 = vld [vmem:[%s0 + $0x8] sm:$0xf]
    %v31 = vld [vmem:[%s0 + $0xc] sm:$0xf]
    %v32 = vld [vmem:[%s0 + $0x10] sm:$0xf]
    %v33 = vld [vmem:[%s0 + $0x14] sm:$0xf]
    %v34 = vld [vmem:[%s0 + $0x18] sm:$0xf]
    %v35 = vld [vmem:[%s0 + $0x1c] sm:$0xf]
    %v36 = vld [vmem:[%s2] sm:$0xff]
    %v37 = vld [vmem:[%s2 + $0x8] sm:$0xff]
    %v38 = vld [vmem:[%s2 + $0x10] sm:$0xff]
    %v39 = vld [vmem:[%s2 + $0x18] sm:$0xff]
    %41 = vset.pattern.permute.xlu0 0
    %42 = vperm.xlu0 %41, %v36
    %v43 = vpop.permute.xlu0 %42
    %46 = vset.pattern.permute.xlu0 0
    %47 = vperm.xlu0 %46, %v37
    %v48 = vpop.permute.xlu0 %47
    %51 = vset.pattern.permute.xlu0 0
    %52 = vperm.xlu0 %51, %v38
    %v53 = vpop.permute.xlu0 %52
    %56 = vset.pattern.permute.xlu0 0
    %57 = vperm.xlu0 %56, %v39
    %v58 = vpop.permute.xlu0 %57
    %v64 = vunpack.c.l.b16 %v24
    %v65 = vunpack.c.l.b16 %v25
    %v66 = vunpack.c.l.b16 %v26
    %v67 = vunpack.c.l.b16 %v27
    %v68 = vpack.c.b16 %v65, %v64
    %v69 = vpack.c.b16 %v67, %v66
    %v78 = vunpack.c.l.b16 %v28
    %v79 = vunpack.c.l.b16 %v29
    %v80 = vunpack.c.l.b16 %v30
    %v81 = vunpack.c.l.b16 %v31
    %v82 = vunpack.c.l.b16 %v32
    %v83 = vunpack.c.l.b16 %v33
    %v84 = vunpack.c.l.b16 %v34
    %v85 = vunpack.c.l.b16 %v35
    %v86 = vpack.c.b16 %v79, %v78
    %v87 = vpack.c.b16 %v81, %v80
    %v88 = vpack.c.b16 %v83, %v82
    %v89 = vpack.c.b16 %v85, %v84
    %vm94 = vcmask 523264
    %v96 = vsel %vm94, %v68, 0
    %v99 = vsel %vm94, %v69, 0
    %101 = vmatpush.bf16.msra.mxu0 0
    %102 = vmatpush.bf16.msra.mxu0 0
    %103 = vmatpush.bf16.msra.mxu0 0
    %104 = vmatpush.bf16.msra.mxu0 0
    %105 = vmatpush.bf16.msra.mxu0 %v89
    %106 = vmatpush.bf16.msra.mxu0 %v88
    %107 = vmatpush.bf16.msra.mxu0 %v87
    %108 = vmatpush.bf16.msra.mxu0 %v86
    %109 = vmatmul.bf16.gmra.mxu0 %v96
    %v110 = vpop.f32.mrf.mxu0
    %v111 = vadd.f32 %v43, %v110
    %v112 = vpop.f32.mrf.mxu0
    %v113 = vadd.f32 %v48, %v112
    %114 = vmatmul.bf16.gmra.mxu0 %v99
    %v115 = vpop.f32.mrf.mxu0
    %v116 = vadd.f32 %v53, %v115
    %v117 = vpop.f32.mrf.mxu0
    %v118 = vadd.f32 %v58, %v117
    %119 = vdwg.mxu0
    %v120 = vmax.f32 %v111, 0.0
    %v121 = vmax.f32 %v113, 0.0
    %v122 = vmax.f32 %v116, 0.0
    %v123 = vmax.f32 %v118, 0.0
    %v124 = vld [vmem:[%s3] sm:$0xff]
    %v125 = vld [vmem:[%s3 + $0x8] sm:$0xff]
    %v126 = vld [vmem:[%s3 + $0x10] sm:$0xff]
    %v127 = vld [vmem:[%s3 + $0x18] sm:$0xff]
    %129 = vset.pattern.permute.xlu0 0
    %130 = vperm.xlu0 %129, %v124
    %v131 = vpop.permute.xlu0 %130
    %134 = vset.pattern.permute.xlu0 0
    %135 = vperm.xlu0 %134, %v125
    %v136 = vpop.permute.xlu0 %135
    %139 = vset.pattern.permute.xlu0 0
    %140 = vperm.xlu0 %139, %v126
    %v141 = vpop.permute.xlu0 %140
    %144 = vset.pattern.permute.xlu0 0
    %145 = vperm.xlu0 %144, %v127
    %v146 = vpop.permute.xlu0 %145
    %v148 = vmul.f32 %v120, %v131
    %v149 = vmul.f32 %v121, %v136
    %v150 = vmul.f32 %v122, %v141
    %v151 = vmul.f32 %v123, %v146
    %v152 = vadd.f32 %v148, %v149
    %v153 = vadd.f32 %v152, %v150
    %v154 = vadd.f32 %v153, %v151
    %v155 = vrot.slane %v154, 4
    %v156 = vadd.f32 %v154, %v155
    %v157 = vrot.slane %v156, 2
    %v158 = vadd.f32 %v156, %v157
    %v159 = vrot.slane %v158, 1
    %v160 = vadd.f32 %v158, %v159
    %v161 = vld [vmem:[#allocation2] sm:$0x1]
    %163 = vset.pattern.permute.xlu0 0
    %164 = vperm.xlu0 %163, %v161
    %v165 = vpop.permute.xlu0 %164
    %v167 = vperm.slane %v165, 0
    %v168 = vadd.f32 %v160, %v167
    %169 = vst [vmem:[#allocation3] sm:$0x1] %v168
    // Predicated region
    $region22: #{tpu_custom_call.1} parent=1 // pred_check
      _
    $region23: #{tpu_custom_call.1} parent=1 // pred_check_branch
      %171 = sbr.rel (0) target = $region25
    $region24: #{tpu_custom_call.1} parent=1 // pred_region
      %173 = vsyncadd [#allocation4], 0
      %s175 = sshll.u32 [#allocation3], 4
      %s176 = int_to_ptr.vmem [resolvable:$true] %s175
      %s177 = sshll.u32 %s5, 4
      %s178 = int_to_ptr.hbm [resolvable:$true] %s177
      %180 = dma.vmem_to_hbm [thread:$0]  %s176, 16, %s178, [#allocation4]
    $region25: #{tpu_custom_call.1} parent=1 // pred_fallthru
      _
    // Predicated region
    $region26: #{tpu_custom_call.1} parent=1 // pred_check
      _
    $region27: #{tpu_custom_call.1} parent=1 // pred_check_branch
      %182 = sbr.rel (0) target = $region29
    $region28: #{tpu_custom_call.1} parent=1 // pred_region
      %184 = dma.done [#allocation4], 16
    $region29: #{tpu_custom_call.1} parent=1 // pred_fallthru
      _
    %185 = vsyncpa [#allocation4], 1

</llo_original>
